<compile_context>
chip_gen: v7x
topology: tpu7x:2x2x1
jax: 0.10.0
libtpu: 0.0.40
codegen_flags: <defaults>
</compile_context>

<pallas_src>
import functools

import jax
import jax.numpy as jnp
from jax.experimental import pallas as pl
from jax.experimental.pallas import tpu as pltpu


def mha_kernel(x_ref, wqkv_ref, wo_ref, bqkv_ref, bo_ref, o_ref, ctx_ref,
               *, num_heads, head_dim):
    E = num_heads * head_dim

    x = x_ref[0].astype(jnp.bfloat16)                        # (T, E)

    # Fused QKV projection: one MXU pass with N = 3E. The q scaling is already
    # folded into wqkv / bqkv on the host. f32 accumulate, f32 bias add.
    qkv = jnp.dot(x, wqkv_ref[...], preferred_element_type=jnp.float32)
    qkv = (qkv + bqkv_ref[...]).astype(jnp.bfloat16)         # (T, 3E)

    # Gather per-head (T, Dh) tiles into a leading head-batch axis. For real
    # configs (E, Dh multiples of 128) these slices are lane-aligned.
    def split_heads(base):
        return jnp.stack(
            [qkv[:, base + h * head_dim: base + (h + 1) * head_dim]
             for h in range(num_heads)],
            axis=0)                                          # (H, T, Dh)

    q = split_heads(0)
    k = split_heads(E)
    v = split_heads(2 * E)

    # Head-batched attention. Contraction on the last axis of both operands ->
    # the MXU consumes k directly, no explicit transpose.
    s = jnp.einsum("htd,hsd->hts", q, k,
                   preferred_element_type=jnp.float32)       # (H, T, T) f32
    m = s.max(axis=-1, keepdims=True)
    e = jnp.exp(s - m)
    p = e * pl.reciprocal(e.sum(axis=-1, keepdims=True), approx=True)
    ctx = jnp.einsum("hts,hsd->htd", p.astype(jnp.bfloat16), v,
                     preferred_element_type=jnp.float32)     # (H, T, Dh)

    # Scatter heads back to the interleaved (T, E) layout in VMEM scratch,
    # then one fat output projection (contraction = E).
    for h in range(num_heads):
        ctx_ref[:, h * head_dim:(h + 1) * head_dim] = ctx[h].astype(jnp.bfloat16)

    out = (jnp.dot(ctx_ref[...], wo_ref[...],
                   preferred_element_type=jnp.float32) + bo_ref[...])
    o_ref[0] = out.astype(o_ref.dtype)


def multi_head_attention(x, params, *, num_heads):
    """x: (B, T, E) float32. params: wq/wk/wv/wo (E, E) stored (in, out) and
    bq/bk/bv/bo (1, E). Returns attn_output (B, T, E) — the first element of
    the PyTorch module's forward() return tuple."""
    B, T, E = x.shape
    assert E % num_heads == 0
    head_dim = E // num_heads
    scaling = head_dim ** (-0.5)

    # Host-side parameter prep: fold the q scaling, fuse QKV into (E, 3E),
    # cast weights to bf16 (biases stay f32 and add onto f32 accumulators).
    wqkv = jnp.concatenate(
        [params["wq"] * scaling, params["wk"], params["wv"]], axis=1
    ).astype(jnp.bfloat16)                                   # (E, 3E)
    bqkv = jnp.concatenate(
        [params["bq"] * scaling, params["bk"], params["bv"]], axis=1
    ).astype(jnp.float32)                                    # (1, 3E)
    wo = params["wo"].astype(jnp.bfloat16)                   # (E, E)
    bo = params["bo"].astype(jnp.float32)                    # (1, E)

    kernel = functools.partial(mha_kernel, num_heads=num_heads,
                               head_dim=head_dim)

    # One batch element per grid step: >= 2 parallel steps for the two v7x
    # TensorCores with this config, and keeps the attention math 3-D.
    # TODO(synk): for long sequences, tile the query dim (grid=(B, T//tq)) so
    # the (T, T) score block and resident bf16 weights stay inside v7x's
    # 64 MiB VMEM, and single-buffer the constant-index weight blocks.
    return pl.pallas_call(
        kernel,
        out_shape=jax.ShapeDtypeStruct((B, T, E), x.dtype),
        grid_spec=pltpu.PrefetchScalarGridSpec(
            num_scalar_prefetch=0,
            grid=(B,),
            in_specs=[
                pl.BlockSpec((1, T, E), lambda b: (b, 0, 0)),   # x
                pl.BlockSpec((E, 3 * E), lambda b: (0, 0)),     # wqkv
                pl.BlockSpec((E, E), lambda b: (0, 0)),         # wo
                pl.BlockSpec((1, 3 * E), lambda b: (0, 0)),     # bqkv
                pl.BlockSpec((1, E), lambda b: (0, 0)),         # bo
            ],
            out_specs=pl.BlockSpec((1, T, E), lambda b: (b, 0, 0)),
            scratch_shapes=[pltpu.VMEM((T, E), jnp.bfloat16)],
        ),
        compiler_params=pltpu.CompilerParams(
            dimension_semantics=("parallel",)),
    )(x, wqkv, wo, bqkv, bo)


def _reference(x, params, *, num_heads):
    """Pure-JAX f32 reference mirroring the PyTorch forward (self-attn path)."""
    B, T, E = x.shape
    Dh = E // num_heads
    scaling = Dh ** (-0.5)
    q = (x @ params["wq"] + params["bq"]) * scaling
    k = x @ params["wk"] + params["bk"]
    v = x @ params["wv"] + params["bv"]

    def split(t):  # (B,T,E) -> (B,H,T,Dh)
        return t.reshape(B, T, num_heads, Dh).transpose(0, 2, 1, 3)

    q, k, v = split(q), split(k), split(v)
    w = jnp.einsum("bhtd,bhsd->bhts", q, k)
    w = jax.nn.softmax(w, axis=-1)
    o = jnp.einsum("bhts,bhsd->bhtd", w, v)
    o = o.transpose(0, 2, 1, 3).reshape(B, T, E)
    return o @ params["wo"] + params["bo"]


def init_params(key, embed_dim):
    """Deterministic synthetic weights (shapes match nn.Linear(E, E, bias=True)
    but stored transposed: (in, out))."""
    ks = jax.random.split(key, 8)
    bound = 1.0 / (embed_dim ** 0.5)
    u = lambda k, s: jax.random.uniform(k, s, jnp.float32, -bound, bound)
    return dict(
        wq=u(ks[0], (embed_dim, embed_dim)), bq=u(ks[1], (1, embed_dim)),
        wk=u(ks[2], (embed_dim, embed_dim)), bk=u(ks[3], (1, embed_dim)),
        wv=u(ks[4], (embed_dim, embed_dim)), bv=u(ks[5], (1, embed_dim)),
        wo=u(ks[6], (embed_dim, embed_dim)), bo=u(ks[7], (1, embed_dim)),
    )
    # TODO(synk): cross-attention / past_key_value / attention_mask /
    # layer_head_mask / output_attentions / dropout branches are not exercised
    # (module defaults, inference).


if __name__ == "__main__":
    B, T, E, H = 2, 8, 32, 4
    key = jax.random.PRNGKey(0)
    kx, kp = jax.random.split(key)
    x = jax.random.normal(kx, (B, T, E), jnp.float32)
    params = init_params(kp, E)

    out = multi_head_attention(x, params, num_heads=H)
    out = jax.block_until_ready(out)

    ref = _reference(x, params, num_heads=H)
    assert out.shape == (B, T, E)
    # Tolerance loosened vs. the pure-f32 version because matmul operands are
    # cast to bf16 (accumulation is still f32).
    err = float(jnp.max(jnp.abs(out - ref)))
    assert jnp.allclose(out, ref, atol=3e-2, rtol=3e-2), \
        f"mismatch vs reference (max abs err {err})"
    print("KERNEL_OK")
</pallas_src>

<mosaic_0001>
module attributes {stable_mosaic.version = 11 : i64} {
  func.func @mha_kernel(%arg0: i32, %arg1: memref<1x8x32xf32, #tpu.memory_space<vmem>>, %arg2: memref<32x96xbf16, #tpu.memory_space<vmem>>, %arg3: memref<32x32xbf16, #tpu.memory_space<vmem>>, %arg4: memref<1x96xf32, #tpu.memory_space<vmem>>, %arg5: memref<1x32xf32, #tpu.memory_space<vmem>>, %arg6: memref<1x8x32xf32, #tpu.memory_space<vmem>>, %arg7: memref<8x32xbf16, #tpu.memory_space<vmem>>) attributes {dimension_semantics = [#tpu.dimension_semantics<parallel>], iteration_bounds = array<i64: 2>, scalar_prefetch = 0 : i64, scratch_operands = 1 : i64, tpu.core_type = #tpu.core_type<tc>, window_params = [{transform_indices = @transform_0, window_bounds = array<i64: 1, 8, 32>}, {pipeline_mode = #tpu.pipeline_mode<synchronous>, transform_indices = @transform_1, window_bounds = array<i64: 32, 96>}, {pipeline_mode = #tpu.pipeline_mode<synchronous>, transform_indices = @transform_2, window_bounds = array<i64: 32, 32>}, {pipeline_mode = #tpu.pipeline_mode<synchronous>, transform_indices = @transform_3, window_bounds = array<i64: 1, 96>}, {pipeline_mode = #tpu.pipeline_mode<synchronous>, transform_indices = @transform_4, window_bounds = array<i64: 1, 32>}, {transform_indices = @transform_5, window_bounds = array<i64: 1, 8, 32>}]} {
    %c0 = arith.constant 0 : index
    %c0_0 = arith.constant 0 : index
    %c0_1 = arith.constant 0 : index
    %0 = vector.load %arg1[%c0, %c0_0, %c0_1] : memref<1x8x32xf32, #tpu.memory_space<vmem>>, vector<1x8x32xf32>
    %1 = vector.shape_cast %0 : vector<1x8x32xf32> to vector<8x32xf32>
    %2 = arith.truncf %1 : vector<8x32xf32> to vector<8x32xbf16>
    %c0_2 = arith.constant 0 : index
    %c0_3 = arith.constant 0 : index
    %3 = vector.load %arg2[%c0_2, %c0_3] : memref<32x96xbf16, #tpu.memory_space<vmem>>, vector<32x96xbf16>
    %cst = arith.constant dense<0.000000e+00> : vector<8x96xf32>
    %4 = tpu.matmul %2, %3, %cst {dimension_numbers = #tpu.dot_dimension_numbers<[1], [0], [0], [1], [0, 0, 1, 1], [], []>} : vector<8x32xbf16>, vector<32x96xbf16>, vector<8x96xf32> -> vector<8x96xf32>
    %c0_4 = arith.constant 0 : index
    %c0_5 = arith.constant 0 : index
    %5 = vector.load %arg4[%c0_4, %c0_5] : memref<1x96xf32, #tpu.memory_space<vmem>>, vector<1x96xf32>
    %6 = vector.broadcast %5 : vector<1x96xf32> to vector<8x96xf32>
    %7 = arith.addf %4, %6 : vector<8x96xf32>
    %8 = arith.truncf %7 : vector<8x96xf32> to vector<8x96xbf16>
    %9 = vector.extract_strided_slice %8 {offsets = [0, 0], sizes = [8, 8], strides = [1, 1]} : vector<8x96xbf16> to vector<8x8xbf16>
    %10 = vector.extract_strided_slice %8 {offsets = [0, 8], sizes = [8, 8], strides = [1, 1]} : vector<8x96xbf16> to vector<8x8xbf16>
    %11 = vector.extract_strided_slice %8 {offsets = [0, 16], sizes = [8, 8], strides = [1, 1]} : vector<8x96xbf16> to vector<8x8xbf16>
    %12 = vector.extract_strided_slice %8 {offsets = [0, 24], sizes = [8, 8], strides = [1, 1]} : vector<8x96xbf16> to vector<8x8xbf16>
    %13 = vector.shape_cast %9 : vector<8x8xbf16> to vector<1x8x8xbf16>
    %14 = vector.shape_cast %10 : vector<8x8xbf16> to vector<1x8x8xbf16>
    %15 = vector.shape_cast %11 : vector<8x8xbf16> to vector<1x8x8xbf16>
    %16 = vector.shape_cast %12 : vector<8x8xbf16> to vector<1x8x8xbf16>
    %17 = tpu.concatenate %13, %14, %15, %16 in 0 : vector<1x8x8xbf16>, vector<1x8x8xbf16>, vector<1x8x8xbf16>, vector<1x8x8xbf16> -> vector<4x8x8xbf16>
    %18 = vector.extract_strided_slice %8 {offsets = [0, 32], sizes = [8, 8], strides = [1, 1]} : vector<8x96xbf16> to vector<8x8xbf16>
    %19 = vector.extract_strided_slice %8 {offsets = [0, 40], sizes = [8, 8], strides = [1, 1]} : vector<8x96xbf16> to vector<8x8xbf16>
    %20 = vector.extract_strided_slice %8 {offsets = [0, 48], sizes = [8, 8], strides = [1, 1]} : vector<8x96xbf16> to vector<8x8xbf16>
    %21 = vector.extract_strided_slice %8 {offsets = [0, 56], sizes = [8, 8], strides = [1, 1]} : vector<8x96xbf16> to vector<8x8xbf16>
    %22 = vector.shape_cast %18 : vector<8x8xbf16> to vector<1x8x8xbf16>
    %23 = vector.shape_cast %19 : vector<8x8xbf16> to vector<1x8x8xbf16>
    %24 = vector.shape_cast %20 : vector<8x8xbf16> to vector<1x8x8xbf16>
    %25 = vector.shape_cast %21 : vector<8x8xbf16> to vector<1x8x8xbf16>
    %26 = tpu.concatenate %22, %23, %24, %25 in 0 : vector<1x8x8xbf16>, vector<1x8x8xbf16>, vector<1x8x8xbf16>, vector<1x8x8xbf16> -> vector<4x8x8xbf16>
    %27 = vector.extract_strided_slice %8 {offsets = [0, 64], sizes = [8, 8], strides = [1, 1]} : vector<8x96xbf16> to vector<8x8xbf16>
    %28 = vector.extract_strided_slice %8 {offsets = [0, 72], sizes = [8, 8], strides = [1, 1]} : vector<8x96xbf16> to vector<8x8xbf16>
    %29 = vector.extract_strided_slice %8 {offsets = [0, 80], sizes = [8, 8], strides = [1, 1]} : vector<8x96xbf16> to vector<8x8xbf16>
    %30 = vector.extract_strided_slice %8 {offsets = [0, 88], sizes = [8, 8], strides = [1, 1]} : vector<8x96xbf16> to vector<8x8xbf16>
    %31 = vector.shape_cast %27 : vector<8x8xbf16> to vector<1x8x8xbf16>
    %32 = vector.shape_cast %28 : vector<8x8xbf16> to vector<1x8x8xbf16>
    %33 = vector.shape_cast %29 : vector<8x8xbf16> to vector<1x8x8xbf16>
    %34 = vector.shape_cast %30 : vector<8x8xbf16> to vector<1x8x8xbf16>
    %35 = tpu.concatenate %31, %32, %33, %34 in 0 : vector<1x8x8xbf16>, vector<1x8x8xbf16>, vector<1x8x8xbf16>, vector<1x8x8xbf16> -> vector<4x8x8xbf16>
    "tpu.trace_start"() <{level = 10 : i32, message = "htd,hsd->hts"}> : () -> ()
    %cst_6 = arith.constant dense<0.000000e+00> : vector<4x8x8xf32>
    %36 = tpu.matmul %17, %26, %cst_6 {dimension_numbers = #tpu.dot_dimension_numbers<[2], [2], [1], [1], [0, 0, 0, 1, 1, 1], [0], [0]>} : vector<4x8x8xbf16>, vector<4x8x8xbf16>, vector<4x8x8xf32> -> vector<4x8x8xf32>
    "tpu.trace_stop"() : () -> ()
    %cst_7 = arith.constant dense<0xFF800000> : vector<4x8xf32>
    %37 = vector.multi_reduction <maximumf>, %36, %cst_7 [2] : vector<4x8x8xf32> to vector<4x8xf32>
    %38 = vector.shape_cast %37 : vector<4x8xf32> to vector<4x8x1xf32>
    %39 = vector.broadcast %38 : vector<4x8x1xf32> to vector<4x8x8xf32>
    %40 = arith.subf %36, %39 : vector<4x8x8xf32>
    %41 = math.exp %40 : vector<4x8x8xf32>
    %cst_8 = arith.constant dense<0.000000e+00> : vector<4x8xf32>
    %42 = vector.multi_reduction <add>, %41, %cst_8 [2] : vector<4x8x8xf32> to vector<4x8xf32>
    %43 = vector.shape_cast %42 : vector<4x8xf32> to vector<4x8x1xf32>
    %44 = tpu.reciprocal %43 {approx = true} : vector<4x8x1xf32> -> vector<4x8x1xf32>
    %45 = vector.broadcast %44 : vector<4x8x1xf32> to vector<4x8x8xf32>
    %46 = arith.mulf %41, %45 : vector<4x8x8xf32>
    %47 = arith.truncf %46 : vector<4x8x8xf32> to vector<4x8x8xbf16>
    "tpu.trace_start"() <{level = 10 : i32, message = "hts,hsd->htd"}> : () -> ()
    %cst_9 = arith.constant dense<0.000000e+00> : vector<4x8x8xf32>
    %48 = tpu.matmul %47, %35, %cst_9 {dimension_numbers = #tpu.dot_dimension_numbers<[2], [1], [1], [2], [0, 0, 0, 1, 1, 2], [0], [0]>} : vector<4x8x8xbf16>, vector<4x8x8xbf16>, vector<4x8x8xf32> -> vector<4x8x8xf32>
    "tpu.trace_stop"() : () -> ()
    %49 = vector.extract_strided_slice %48 {offsets = [0, 0, 0], sizes = [1, 8, 8], strides = [1, 1, 1]} : vector<4x8x8xf32> to vector<1x8x8xf32>
    %50 = vector.shape_cast %49 : vector<1x8x8xf32> to vector<8x8xf32>
    %51 = arith.truncf %50 : vector<8x8xf32> to vector<8x8xbf16>
    %c0_10 = arith.constant 0 : index
    %c0_11 = arith.constant 0 : index
    %52 = vector.load %arg7[%c0_10, %c0_11] : memref<8x32xbf16, #tpu.memory_space<vmem>>, vector<8x8xbf16>
    tpu.vector_store %arg7[%c0_10, %c0_11], %51 {strides = array<i32>} : memref<8x32xbf16, #tpu.memory_space<vmem>>, vector<8x8xbf16>,
    %53 = vector.extract_strided_slice %48 {offsets = [1, 0, 0], sizes = [1, 8, 8], strides = [1, 1, 1]} : vector<4x8x8xf32> to vector<1x8x8xf32>
    %54 = vector.shape_cast %53 : vector<1x8x8xf32> to vector<8x8xf32>
    %55 = arith.truncf %54 : vector<8x8xf32> to vector<8x8xbf16>
    %c0_12 = arith.constant 0 : index
    %c8 = arith.constant 8 : index
    %56 = vector.load %arg7[%c0_12, %c8] : memref<8x32xbf16, #tpu.memory_space<vmem>>, vector<8x8xbf16>
    tpu.vector_store %arg7[%c0_12, %c8], %55 {strides = array<i32>} : memref<8x32xbf16, #tpu.memory_space<vmem>>, vector<8x8xbf16>,
    %57 = vector.extract_strided_slice %48 {offsets = [2, 0, 0], sizes = [1, 8, 8], strides = [1, 1, 1]} : vector<4x8x8xf32> to vector<1x8x8xf32>
    %58 = vector.shape_cast %57 : vector<1x8x8xf32> to vector<8x8xf32>
    %59 = arith.truncf %58 : vector<8x8xf32> to vector<8x8xbf16>
    %c0_13 = arith.constant 0 : index
    %c16 = arith.constant 16 : index
    %60 = vector.load %arg7[%c0_13, %c16] : memref<8x32xbf16, #tpu.memory_space<vmem>>, vector<8x8xbf16>
    tpu.vector_store %arg7[%c0_13, %c16], %59 {strides = array<i32>} : memref<8x32xbf16, #tpu.memory_space<vmem>>, vector<8x8xbf16>,
    %61 = vector.extract_strided_slice %48 {offsets = [3, 0, 0], sizes = [1, 8, 8], strides = [1, 1, 1]} : vector<4x8x8xf32> to vector<1x8x8xf32>
    %62 = vector.shape_cast %61 : vector<1x8x8xf32> to vector<8x8xf32>
    %63 = arith.truncf %62 : vector<8x8xf32> to vector<8x8xbf16>
    %c0_14 = arith.constant 0 : index
    %c24 = arith.constant 24 : index
    %64 = vector.load %arg7[%c0_14, %c24] : memref<8x32xbf16, #tpu.memory_space<vmem>>, vector<8x8xbf16>
    tpu.vector_store %arg7[%c0_14, %c24], %63 {strides = array<i32>} : memref<8x32xbf16, #tpu.memory_space<vmem>>, vector<8x8xbf16>,
    %c0_15 = arith.constant 0 : index
    %c0_16 = arith.constant 0 : index
    %65 = vector.load %arg7[%c0_15, %c0_16] : memref<8x32xbf16, #tpu.memory_space<vmem>>, vector<8x32xbf16>
    %c0_17 = arith.constant 0 : index
    %c0_18 = arith.constant 0 : index
    %66 = vector.load %arg3[%c0_17, %c0_18] : memref<32x32xbf16, #tpu.memory_space<vmem>>, vector<32x32xbf16>
    %cst_19 = arith.constant dense<0.000000e+00> : vector<8x32xf32>
    %67 = tpu.matmul %65, %66, %cst_19 {dimension_numbers = #tpu.dot_dimension_numbers<[1], [0], [0], [1], [0, 0, 1, 1], [], []>} : vector<8x32xbf16>, vector<32x32xbf16>, vector<8x32xf32> -> vector<8x32xf32>
    %c0_20 = arith.constant 0 : index
    %c0_21 = arith.constant 0 : index
    %68 = vector.load %arg5[%c0_20, %c0_21] : memref<1x32xf32, #tpu.memory_space<vmem>>, vector<1x32xf32>
    %69 = vector.broadcast %68 : vector<1x32xf32> to vector<8x32xf32>
    %70 = arith.addf %67, %69 : vector<8x32xf32>
    %c0_22 = arith.constant 0 : index
    %c0_23 = arith.constant 0 : index
    %c0_24 = arith.constant 0 : index
    %71 = vector.load %arg6[%c0_22, %c0_23, %c0_24] : memref<1x8x32xf32, #tpu.memory_space<vmem>>, vector<1x8x32xf32>
    %72 = vector.shape_cast %71 : vector<1x8x32xf32> to vector<8x32xf32>
    %73 = vector.shape_cast %70 : vector<8x32xf32> to vector<1x8x32xf32>
    tpu.vector_store %arg6[%c0_22, %c0_23, %c0_24], %73 {strides = array<i32>} : memref<1x8x32xf32, #tpu.memory_space<vmem>>, vector<1x8x32xf32>,
    return
  }
  func.func @transform_0(%arg0: i32) -> (i32, i32, i32) {
    %c0_i32 = arith.constant 0 : i32
    %c0_i32_0 = arith.constant 0 : i32
    %c0_i32_1 = arith.constant 0 : i32
    return %arg0, %c0_i32, %c0_i32_0 : i32, i32, i32
  }
  func.func @transform_1(%arg0: i32) -> (i32, i32) {
    %c0_i32 = arith.constant 0 : i32
    %c0_i32_0 = arith.constant 0 : i32
    %c0_i32_1 = arith.constant 0 : i32
    return %c0_i32, %c0_i32_0 : i32, i32
  }
  func.func @transform_2(%arg0: i32) -> (i32, i32) {
    %c0_i32 = arith.constant 0 : i32
    %c0_i32_0 = arith.constant 0 : i32
    %c0_i32_1 = arith.constant 0 : i32
    return %c0_i32, %c0_i32_0 : i32, i32
  }
  func.func @transform_3(%arg0: i32) -> (i32, i32) {
    %c0_i32 = arith.constant 0 : i32
    %c0_i32_0 = arith.constant 0 : i32
    %c0_i32_1 = arith.constant 0 : i32
    return %c0_i32, %c0_i32_0 : i32, i32
  }
  func.func @transform_4(%arg0: i32) -> (i32, i32) {
    %c0_i32 = arith.constant 0 : i32
    %c0_i32_0 = arith.constant 0 : i32
    %c0_i32_1 = arith.constant 0 : i32
    return %c0_i32, %c0_i32_0 : i32, i32
  }
  func.func @transform_5(%arg0: i32) -> (i32, i32, i32) {
    %c0_i32 = arith.constant 0 : i32
    %c0_i32_0 = arith.constant 0 : i32
    %c0_i32_1 = arith.constant 0 : i32
    return %arg0, %c0_i32, %c0_i32_0 : i32, i32, i32
  }
}

</mosaic_0001>

<llo_original>
// kernel: tpu_custom_call.1
$region0: #{tpu_custom_call.1}
  #allocation0 [shape = 'u32[]', space=smem, size = 0x4, offset = 0x4, fixed_abs, tag = 'smem constant byte address 0x4 - core index']
  #allocation1 [shape = 'u32[144,128]{1,0:T(1,128)}', space=vmem, size = 0x12000, scoped, tag = 'internal scratch']
  #allocation2 [shape = 'bf16[8,32]{1,0:T(8,128)(2,1)}', space=vmem, size = 0x800, scoped, tag = 'scratch operand']
  %s0 = inlined_call_operand.hbm [shape: f32[2,8,32], index: 0, kind: input, shape index: {}]
  %s1 = inlined_call_operand.hbm [shape: bf16[32,96], index: 1, kind: input, shape index: {}]
  %s2 = inlined_call_operand.hbm [shape: bf16[32,32], index: 2, kind: input, shape index: {}]
  %s3 = inlined_call_operand.vmem [shape: f32[1,96], index: 3, kind: input, shape index: {}]
  %s4 = inlined_call_operand.vmem [shape: f32[1,32], index: 4, kind: input, shape index: {}]
  %s5 = inlined_call_operand.hbm [shape: f32[2,8,32], index: 5, kind: output, shape index: {}]
  %s6 = sld [smem:[#allocation0]]
  $region65: #{tpu_custom_call.1} parent=0
    _
  %s8 = ssub.s32 1, %s6
  %s9 = scalar_select 0, %s8, %s6
  $region1: #{tpu_custom_call.1} parent=0
    #allocation3 [shape = 'u8[8192]{0}', space=vmem, size = 0x2000, scoped, tag = 'input window, operand 0']
    #allocation4 [shape = 's32[2]{0}', space=sflag, size = 0x8, scoped, tag = 'scoped memory for tpu_custom_call.1']
    #allocation5 [shape = 's32[2]{0}', space=sflag, size = 0x8, scoped, tag = 'scoped memory for tpu_custom_call.1']
    #allocation6 [shape = 'u8[8192]{0}', space=vmem, size = 0x2000, scoped, tag = 'input window, operand 1, single buffered']
    #allocation7 [shape = 's32[1]{0}', space=sflag, size = 0x4, scoped, tag = 'scoped memory for tpu_custom_call.1']
    #allocation8 [shape = 'u8[8192]{0}', space=vmem, size = 0x2000, scoped, tag = 'input window, operand 2, single buffered']
    #allocation9 [shape = 'u8[8192]{0}', space=vmem, size = 0x2000, scoped, tag = 'output window, operand 0']
    %10 = vsyncpa [#allocation4], 0
    %s11 = scalar_lea.sflag [#allocation4], 1
    %12 = vsyncpa %s11, 0
    %13 = vsyncpa [#allocation7], 0
    %14 = vsyncpa [#allocation5], 0
    %s15 = scalar_lea.sflag [#allocation5], 1
    %16 = vsyncpa %s15, 0
    loop: start=0, step=1, limit=4
    $region2: #{tpu_custom_call.1} parent=1 // loop_pre_header
      _
    $region3: #{tpu_custom_call.1} parent=1 // loop_header
      %s18 = sphi 0, %s22
      %p19 = scmp.ge.s32.totalorder %s18, 4
      %s28 = sphi 0, %s30
      %s31 = sphi 0, %s28
      %s32 = sphi 0, %s31
      %s48 = sphi 0, %s32
      %s52 = sphi 0, %s52
      %s54 = sphi 0, %s52
      %s55 = sphi 0, %s54
      %s69 = sphi 0, %s55
      %s73 = sphi 0, %s73
      %s75 = sphi 0, %s73
      %s76 = sphi 0, %s75
      %s90 = sphi 0, %s76
      %s94 = sphi 0, %s94
      %s96 = sphi 0, %s94
      %s97 = sphi 0, %s96
      %s111 = sphi 0, %s97
      %s115 = sphi 0, %s115
      %s117 = sphi 0, %s115
      %s118 = sphi 0, %s117
      %s132 = sphi 0, %s118
      %s138 = sphi 0, %s140
      %s141 = sphi 0, %s138
      %s142 = sphi 0, %s141
      %s158 = sphi 0, %s142
    $region4: #{tpu_custom_call.1} parent=1 // loop_header_branch
      %21 = sbr.rel (%p19) target = $region8
    $region5: #{tpu_custom_call.1} parent=1 // loop_body
      %s23 = ssub.s32 %s18, 1
      %s24 = ssub.s32 %s18, 2
      %s25 = sadd.s32 %s18, 1
      %s26 = ssub.s32 %s18, %s25
      %p27 = scmp.eq.s32.totalorder %s26, 0
      %s29 = sadd.s32 %s28, 1
      %s30 = scalar_select %p27, %s28, %s29
      %p33 = pneg %p27
      %p34 = scmp.eq.s32.totalorder %s18, 1
      %p35 = por %p33, %p34
      %p36 = scmp.ne.s32.totalorder %s28, %s31
      %p37 = scmp.eq.s32.totalorder %s18, 0
      %p38 = por %p36, %p37
      %p39 = scmp.ne.s32.totalorder %s28, %s31
      %p40 = scmp.eq.s32.totalorder %s23, 1
      %p41 = por %p39, %p40
      %p42 = scmp.ne.s32.totalorder %s31, %s32
      %p43 = scmp.eq.s32.totalorder %s23, 0
      %p44 = por %p42, %p43
      %p45 = scmp.ne.s32.totalorder %s31, %s32
      %p46 = scmp.eq.s32.totalorder %s24, 1
      %p47 = por %p45, %p46
      %p49 = scmp.ne.s32.totalorder %s32, %s48
      %p50 = scmp.eq.s32.totalorder %s24, 0
      %p51 = por %p49, %p50
      %s53 = sadd.s32 %s52, 1
      %p56 = scmp.eq.s32.totalorder %s18, 1
      %p57 = scmp.ne.s32.totalorder %s52, %s54
      %p58 = scmp.eq.s32.totalorder %s18, 0
      %p59 = por %p57, %p58
      %p60 = scmp.ne.s32.totalorder %s52, %s54
      %p61 = scmp.eq.s32.totalorder %s23, 1
      %p62 = por %p60, %p61
      %p63 = scmp.ne.s32.totalorder %s54, %s55
      %p64 = scmp.eq.s32.totalorder %s23, 0
      %p65 = por %p63, %p64
      %p66 = scmp.ne.s32.totalorder %s54, %s55
      %p67 = scmp.eq.s32.totalorder %s24, 1
      %p68 = por %p66, %p67
      %p70 = scmp.ne.s32.totalorder %s55, %s69
      %p71 = scmp.eq.s32.totalorder %s24, 0
      %p72 = por %p70, %p71
      %s74 = sadd.s32 %s73, 1
      %p77 = scmp.eq.s32.totalorder %s18, 1
      %p78 = scmp.ne.s32.totalorder %s73, %s75
      %p79 = scmp.eq.s32.totalorder %s18, 0
      %p80 = por %p78, %p79
      %p81 = scmp.ne.s32.totalorder %s73, %s75
      %p82 = scmp.eq.s32.totalorder %s23, 1
      %p83 = por %p81, %p82
      %p84 = scmp.ne.s32.totalorder %s75, %s76
      %p85 = scmp.eq.s32.totalorder %s23, 0
      %p86 = por %p84, %p85
      %p87 = scmp.ne.s32.totalorder %s75, %s76
      %p88 = scmp.eq.s32.totalorder %s24, 1
      %p89 = por %p87, %p88
      %p91 = scmp.ne.s32.totalorder %s76, %s90
      %p92 = scmp.eq.s32.totalorder %s24, 0
      %p93 = por %p91, %p92
      %s95 = sadd.s32 %s94, 1
      %p98 = scmp.eq.s32.totalorder %s18, 1
      %p99 = scmp.ne.s32.totalorder %s94, %s96
      %p100 = scmp.eq.s32.totalorder %s18, 0
      %p101 = por %p99, %p100
      %p102 = scmp.ne.s32.totalorder %s94, %s96
      %p103 = scmp.eq.s32.totalorder %s23, 1
      %p104 = por %p102, %p103
      %p105 = scmp.ne.s32.totalorder %s96, %s97
      %p106 = scmp.eq.s32.totalorder %s23, 0
      %p107 = por %p105, %p106
      %p108 = scmp.ne.s32.totalorder %s96, %s97
      %p109 = scmp.eq.s32.totalorder %s24, 1
      %p110 = por %p108, %p109
      %p112 = scmp.ne.s32.totalorder %s97, %s111
      %p113 = scmp.eq.s32.totalorder %s24, 0
      %p114 = por %p112, %p113
      %s116 = sadd.s32 %s115, 1
      %p119 = scmp.eq.s32.totalorder %s18, 1
      %p120 = scmp.ne.s32.totalorder %s115, %s117
      %p121 = scmp.eq.s32.totalorder %s18, 0
      %p122 = por %p120, %p121
      %p123 = scmp.ne.s32.totalorder %s115, %s117
      %p124 = scmp.eq.s32.totalorder %s23, 1
      %p125 = por %p123, %p124
      %p126 = scmp.ne.s32.totalorder %s117, %s118
      %p127 = scmp.eq.s32.totalorder %s23, 0
      %p128 = por %p126, %p127
      %p129 = scmp.ne.s32.totalorder %s117, %s118
      %p130 = scmp.eq.s32.totalorder %s24, 1
      %p131 = por %p129, %p130
      %p133 = scmp.ne.s32.totalorder %s118, %s132
      %p134 = scmp.eq.s32.totalorder %s24, 0
      %p135 = por %p133, %p134
      %s136 = ssub.s32 %s18, %s25
      %p137 = scmp.eq.s32.totalorder %s136, 0
      %s139 = sadd.s32 %s138, 1
      %s140 = scalar_select %p137, %s138, %s139
      %p143 = pneg %p137
      %p144 = scmp.eq.s32.totalorder %s18, 1
      %p145 = por %p143, %p144
      %p146 = scmp.ne.s32.totalorder %s138, %s141
      %p147 = scmp.eq.s32.totalorder %s18, 0
      %p148 = por %p146, %p147
      %p149 = scmp.ne.s32.totalorder %s138, %s141
      %p150 = scmp.eq.s32.totalorder %s23, 1
      %p151 = por %p149, %p150
      %p152 = scmp.ne.s32.totalorder %s141, %s142
      %p153 = scmp.eq.s32.totalorder %s23, 0
      %p154 = por %p152, %p153
      %p155 = scmp.ne.s32.totalorder %s141, %s142
      %p156 = scmp.eq.s32.totalorder %s24, 1
      %p157 = por %p155, %p156
      %p159 = scmp.ne.s32.totalorder %s142, %s158
      %p160 = scmp.eq.s32.totalorder %s24, 0
      %p161 = por %p159, %p160
      %p162 = scmp.le.s32.totalorder 1, %s18
      %p163 = scmp.lt.s32.totalorder %s18, 3
      %p164 = pnand %p162, %p163
      %p165 = pneg %p164
      // Predicated region
      $region9: #{tpu_custom_call.1} parent=5 // pred_check
        _
      $region10: #{tpu_custom_call.1} parent=5 // pred_check_branch
        %167 = sbr.rel (%p164) target = $region12
      $region11: #{tpu_custom_call.1} parent=5 // pred_region
        %s168 = ssub.s32 %s18, 1
        // Predicated region
        $region13: #{tpu_custom_call.1} parent=11 // pred_check
          %p169 = pneg %p65
        $region14: #{tpu_custom_call.1} parent=11 // pred_check_branch
          %171 = sbr.rel (%p169) target = $region16
        $region15: #{tpu_custom_call.1} parent=11 // pred_region
          %s173 = ssub.s32 256, 256
          %174 = vsyncadd [#allocation7], %s173
          %s175 = sshll.u32 [#allocation6], 4
          %s176 = int_to_ptr.vmem [resolvable:$true] %s175
          %181 = dma.hbm_to_vmem [thread:$0]  %s1, 256, %s176, [#allocation7], 64, 64, 4
        $region16: #{tpu_custom_call.1} parent=11 // pred_fallthru
          _
        // Predicated region
        $region17: #{tpu_custom_call.1} parent=11 // pred_check
          %p182 = pneg %p86
        $region18: #{tpu_custom_call.1} parent=11 // pred_check_branch
          %184 = sbr.rel (%p182) target = $region20
        $region19: #{tpu_custom_call.1} parent=11 // pred_region
          %s186 = ssub.s32 256, 256
          %187 = vsyncadd [#allocation7], %s186
          %s188 = sshll.u32 [#allocation8], 4
          %s189 = int_to_ptr.vmem [resolvable:$true] %s188
          %194 = dma.hbm_to_vmem [thread:$0]  %s2, 256, %s189, [#allocation7], 64, 64, 4
        $region20: #{tpu_custom_call.1} parent=11 // pred_fallthru
          _
        // Predicated region
        $region21: #{tpu_custom_call.1} parent=11 // pred_check
          %p195 = pneg %p107
        $region22: #{tpu_custom_call.1} parent=11 // pred_check_branch
          %197 = sbr.rel (%p195) target = $region24
        $region23: #{tpu_custom_call.1} parent=11 // pred_region
          _
        $region24: #{tpu_custom_call.1} parent=11 // pred_fallthru
          _
        // Predicated region
        $region25: #{tpu_custom_call.1} parent=11 // pred_check
          %p198 = pneg %p128
        $region26: #{tpu_custom_call.1} parent=11 // pred_check_branch
          %200 = sbr.rel (%p198) target = $region28
        $region27: #{tpu_custom_call.1} parent=11 // pred_region
          _
        $region28: #{tpu_custom_call.1} parent=11 // pred_fallthru
          _
      $region12: #{tpu_custom_call.1} parent=5 // pred_fallthru
        _
      %p201 = scmp.lt.s32.totalorder %s18, 2
      // Predicated region
      $region29: #{tpu_custom_call.1} parent=5 // pred_check
        %p202 = pneg %p201
      $region30: #{tpu_custom_call.1} parent=5 // pred_check_branch
        %204 = sbr.rel (%p202) target = $region32
      $region31: #{tpu_custom_call.1} parent=5 // pred_region
        // Predicated region
        $region33: #{tpu_custom_call.1} parent=31 // pred_check
          %p205 = pneg %p38
        $region34: #{tpu_custom_call.1} parent=31 // pred_check_branch
          %207 = sbr.rel (%p205) target = $region36
        $region35: #{tpu_custom_call.1} parent=31 // pred_region
          %s208 = sand.u32 %s28, 1
          %s209 = scalar_lea.sflag [#allocation4], %s208
          %s210 = sand.u32 %s28, 1
          %s211 = smul.addr %s210, 8
          %s212 = scalar_lea.vmem [#allocation3], %s211
          %s214 = ssub.s32 128, 128
          %215 = vsyncadd %s209, %s214
          %s216 = smul.addr %s18, 128
          %s217 = scalar_lea.hbm %s0, %s216
          %s219 = sshll.u32 %s212, 4
          %s220 = int_to_ptr.vmem [resolvable:$true] %s219
          %222 = dma.hbm_to_vmem [thread:$0]  %s217, 128, %s220, %s209
        $region36: #{tpu_custom_call.1} parent=31 // pred_fallthru
          _
      $region32: #{tpu_custom_call.1} parent=5 // pred_fallthru
        _
      %p223 = scmp.le.s32.totalorder 1, %s18
      %p224 = scmp.lt.s32.totalorder %s18, 3
      %p225 = pnand %p223, %p224
      %p226 = pneg %p225
      // Predicated region
      $region37: #{tpu_custom_call.1} parent=5 // pred_check
        _
      $region38: #{tpu_custom_call.1} parent=5 // pred_check_branch
        %228 = sbr.rel (%p225) target = $region40
      $region39: #{tpu_custom_call.1} parent=5 // pred_region
        %s229 = ssub.s32 %s18, 1
        %s230 = sand.u32 %s31, 1
        %s231 = scalar_lea.sflag [#allocation4], %s230
        %s232 = sand.u32 %s31, 1
        %s233 = smul.addr %s232, 8
        %s234 = scalar_lea.vmem [#allocation3], %s233
        // Predicated region
        $region41: #{tpu_custom_call.1} parent=39 // pred_check
          %p235 = pneg %p44
        $region42: #{tpu_custom_call.1} parent=39 // pred_check_branch
          %237 = sbr.rel (%p235) target = $region44
        $region43: #{tpu_custom_call.1} parent=39 // pred_region
          %238 = dma.done %s231, 128
        $region44: #{tpu_custom_call.1} parent=39 // pred_fallthru
          _
        // Predicated region
        $region45: #{tpu_custom_call.1} parent=39 // pred_check
          %p239 = pneg %p65
        $region46: #{tpu_custom_call.1} parent=39 // pred_check_branch
          %241 = sbr.rel (%p239) target = $region48
        $region47: #{tpu_custom_call.1} parent=39 // pred_region
          %242 = dma.done [#allocation7], 256
        $region48: #{tpu_custom_call.1} parent=39 // pred_fallthru
          _
        // Predicated region
        $region49: #{tpu_custom_call.1} parent=39 // pred_check
          %p243 = pneg %p86
        $region50: #{tpu_custom_call.1} parent=39 // pred_check_branch
          %245 = sbr.rel (%p243) target = $region52
        $region51: #{tpu_custom_call.1} parent=39 // pred_region
          %246 = dma.done [#allocation7], 256
        $region52: #{tpu_custom_call.1} parent=39 // pred_fallthru
          _
        %s247 = sand.u32 %s31, 1
        %s248 = scalar_lea.sflag [#allocation4], %s247
        %s249 = sand.u32 %s31, 1
        %s250 = smul.addr %s249, 8
        %s251 = scalar_lea.vmem [#allocation3], %s250
        %p252 = pneg %p44
        %p253 = pneg %p41
        %p254 = pneg %p65
        %p255 = pneg %p62
        %p256 = pneg %p86
        %p257 = pneg %p83
        %p258 = pneg %p107
        %p259 = pneg %p104
        %p260 = pneg %p128
        %p261 = pneg %p125
        %p262 = pneg %p154
        %p263 = pneg %p151
        %s264 = sand.u32 %s141, 1
        %s265 = scalar_lea.sflag [#allocation5], %s264
        %s266 = sand.u32 %s141, 1
        %s267 = smul.addr %s266, 8
        %s268 = scalar_lea.vmem [#allocation9], %s267
        %v270 = vld [vmem:[%s234] sm:$0xff]
        %v271 = vpack.c.bf16 %v270, %v270
        %v272 = vld [vmem:[#allocation6] sm:$0xf]
        %v273 = vld [vmem:[#allocation6 + $0x4] sm:$0xf]
        %v274 = vld [vmem:[#allocation6 + $0x8] sm:$0xf]
        %v275 = vld [vmem:[#allocation6 + $0xc] sm:$0xf]
        %v276 = vld [vmem:[%s3] sm:$0x1]
        %v278 = vlaneseq
        %v279 = vshrl.u32 %v278, 7
        %v280 = vsub.s32 0, %v279
        %v281 = vrot.slane %v276, %v280
        %v287 = vunpack.c.l.b16 %v272
        %v288 = vunpack.c.l.b16 %v273
        %v289 = vunpack.c.l.b16 %v274
        %v290 = vunpack.c.l.b16 %v275
        %v291 = vpack.c.b16 %v288, %v287
        %v292 = vpack.c.b16 %v290, %v289
        %vm295 = vcmask 261120
        %v297 = vsel %vm295, %v271, 0
        %299 = vmatprep.subr.bf16.mxu0 0
        %300 = vmatpush1.bf16.msra.mxu0 %v291
        %301 = vmatprep.subr.bf16.mxu0 0
        %302 = vmatpush1.bf16.msra.mxu0 %v292
        %303 = vmatprep.subr.bf16.mxu0 0
        %304 = vmatpush1.bf16.msra.mxu0 0
        %305 = vmatprep.subr.bf16.mxu0 0
        %306 = vmatpush1.bf16.msra.mxu0 0
        %307 = vmatprep.subr.bf16.mxu0 0
        %308 = vmatpush1.bf16.msra.mxu0 0
        %309 = vmatprep.subr.bf16.mxu0 0
        %310 = vmatpush1.bf16.msra.mxu0 0
        %311 = vmatprep.subr.bf16.mxu0 0
        %312 = vmatpush1.bf16.msra.mxu0 0
        %313 = vmatprep.subr.bf16.mxu0 0
        %314 = vmatpush1.bf16.msra.mxu0 0
        %315 = vmatprep.subr.bf16.mxu0 0
        %316 = vmatpush1.bf16.msra.mxu0 0
        %317 = vmatprep.subr.bf16.mxu0 0
        %318 = vmatpush1.bf16.msra.mxu0 0
        %319 = vmatprep.subr.bf16.mxu0 0
        %320 = vmatpush1.bf16.msra.mxu0 0
        %321 = vmatprep.subr.bf16.mxu0 0
        %322 = vmatpush1.bf16.msra.mxu0 0
        %323 = vmatprep.subr.bf16.mxu0 0
        %324 = vmatpush1.bf16.msra.mxu0 0
        %325 = vmatprep.subr.bf16.mxu0 0
        %326 = vmatpush1.bf16.msra.mxu0 0
        %327 = vmatprep.subr.bf16.mxu0 0
        %328 = vmatpush1.bf16.msra.mxu0 0
        %329 = vmatprep.subr.bf16.mxu0 0
        %330 = vmatpush1.bf16.msra.mxu0 0
        %331 = vmatprep.mubr.bf16.mxu0 0
        %332 = vmatmul.mubr.bf16.gmra.mrb[0].mxu0 %v297
        %v333 = vpop.f32.mrb[0].mxu0
        %v334 = vadd.f32 %v281, %v333
        %v335 = vpop.f32.mrb[0].mxu0
        %v336 = vpop.f32.mrb[0].mxu0
        %v337 = vpop.f32.mrb[0].mxu0
        %338 = vdwg.mxu0
        %v339 = vpack.c.bf16 %v334, %v334
        %341 = vrot.lane.b32.xlu0 %v339, 120
        %v342 = vpop.permute.xlu0 %341
        %343 = vrot.lane.b32.xlu0 %v339, 112
        %v344 = vpop.permute.xlu0 %343
        %345 = vrot.lane.b32.xlu0 %v339, 104
        %v346 = vpop.permute.xlu0 %345
        %347 = vrot.lane.b32.xlu0 %v339, 96
        %v348 = vpop.permute.xlu0 %347
        %vm349 = vcmask 64512
        %v351 = vsel %vm349, %v339, 0
        %v354 = vsel %vm349, %v348, 0
        %356 = vmatprep.subr.bf16.mxu0 0
        %357 = vmatpush1.bf16.xpose.msra.mxu0 %v354
        %358 = vmatprep.subr.bf16.mxu0 0
        %359 = vmatpush1.bf16.xpose.msra.mxu0 0
        %360 = vmatprep.subr.bf16.mxu0 0
        %361 = vmatpush1.bf16.xpose.msra.mxu0 0
        %362 = vmatprep.subr.bf16.mxu0 0
        %363 = vmatpush1.bf16.xpose.msra.mxu0 0
        %364 = vmatprep.subr.bf16.mxu0 0
        %365 = vmatpush1.bf16.xpose.msra.mxu0 0
        %366 = vmatprep.subr.bf16.mxu0 0
        %367 = vmatpush1.bf16.xpose.msra.mxu0 0
        %368 = vmatprep.subr.bf16.mxu0 0
        %369 = vmatpush1.bf16.xpose.msra.mxu0 0
        %370 = vmatprep.subr.bf16.mxu0 0
        %371 = vmatpush1.bf16.xpose.msra.mxu0 0
        %372 = vmatprep.subr.bf16.mxu0 0
        %373 = vmatpush1.bf16.xpose.msra.mxu0 0
        %374 = vmatprep.subr.bf16.mxu0 0
        %375 = vmatpush1.bf16.xpose.msra.mxu0 0
        %376 = vmatprep.subr.bf16.mxu0 0
        %377 = vmatpush1.bf16.xpose.msra.mxu0 0
        %378 = vmatprep.subr.bf16.mxu0 0
        %379 = vmatpush1.bf16.xpose.msra.mxu0 0
        %380 = vmatprep.subr.bf16.mxu0 0
        %381 = vmatpush1.bf16.xpose.msra.mxu0 0
        %382 = vmatprep.subr.bf16.mxu0 0
        %383 = vmatpush1.bf16.xpose.msra.mxu0 0
        %384 = vmatprep.subr.bf16.mxu0 0
        %385 = vmatpush1.bf16.xpose.msra.mxu0 0
        %386 = vmatprep.subr.bf16.mxu0 0
        %387 = vmatpush1.bf16.xpose.msra.mxu0 0
        %388 = vmatprep.mubr.bf16.mxu0 0
        %389 = vmatmul.mubr.bf16.gmra.mrb[0].mxu0 %v351
        %v390 = vpop.f32.mrb[0].mxu0
        %v391 = vadd.f32 0.0, %v390
        %v392 = vpop.f32.mrb[0].mxu0
        %v393 = vpop.f32.mrb[0].mxu0
        %v394 = vpop.f32.mrb[0].mxu0
        %395 = vdwg.mxu0
        %396 = vrot.lane.b32.xlu0 %v342, 96
        %v397 = vpop.permute.xlu0 %396
        %v399 = vsel %vm349, %v342, 0
        %v402 = vsel %vm349, %v397, 0
        %404 = vmatprep.subr.bf16.mxu0 0
        %405 = vmatpush1.bf16.xpose.msra.mxu0 %v402
        %406 = vmatprep.subr.bf16.mxu0 0
        %407 = vmatpush1.bf16.xpose.msra.mxu0 0
        %408 = vmatprep.subr.bf16.mxu0 0
        %409 = vmatpush1.bf16.xpose.msra.mxu0 0
        %410 = vmatprep.subr.bf16.mxu0 0
        %411 = vmatpush1.bf16.xpose.msra.mxu0 0
        %412 = vmatprep.subr.bf16.mxu0 0
        %413 = vmatpush1.bf16.xpose.msra.mxu0 0
        %414 = vmatprep.subr.bf16.mxu0 0
        %415 = vmatpush1.bf16.xpose.msra.mxu0 0
        %416 = vmatprep.subr.bf16.mxu0 0
        %417 = vmatpush1.bf16.xpose.msra.mxu0 0
        %418 = vmatprep.subr.bf16.mxu0 0
        %419 = vmatpush1.bf16.xpose.msra.mxu0 0
        %420 = vmatprep.subr.bf16.mxu0 0
        %421 = vmatpush1.bf16.xpose.msra.mxu0 0
        %422 = vmatprep.subr.bf16.mxu0 0
        %423 = vmatpush1.bf16.xpose.msra.mxu0 0
        %424 = vmatprep.subr.bf16.mxu0 0
        %425 = vmatpush1.bf16.xpose.msra.mxu0 0
        %426 = vmatprep.subr.bf16.mxu0 0
        %427 = vmatpush1.bf16.xpose.msra.mxu0 0
        %428 = vmatprep.subr.bf16.mxu0 0
        %429 = vmatpush1.bf16.xpose.msra.mxu0 0
        %430 = vmatprep.subr.bf16.mxu0 0
        %431 = vmatpush1.bf16.xpose.msra.mxu0 0
        %432 = vmatprep.subr.bf16.mxu0 0
        %433 = vmatpush1.bf16.xpose.msra.mxu0 0
        %434 = vmatprep.subr.bf16.mxu0 0
        %435 = vmatpush1.bf16.xpose.msra.mxu0 0
        %436 = vmatprep.mubr.bf16.mxu0 0
        %437 = vmatmul.mubr.bf16.gmra.mrb[0].mxu0 %v399
        %v438 = vpop.f32.mrb[0].mxu0
        %v439 = vadd.f32 0.0, %v438
        %v440 = vpop.f32.mrb[0].mxu0
        %v441 = vpop.f32.mrb[0].mxu0
        %v442 = vpop.f32.mrb[0].mxu0
        %443 = vdwg.mxu0
        %444 = vrot.lane.b32.xlu0 %v344, 96
        %v445 = vpop.permute.xlu0 %444
        %v447 = vsel %vm349, %v344, 0
        %v450 = vsel %vm349, %v445, 0
        %452 = vmatprep.subr.bf16.mxu0 0
        %453 = vmatpush1.bf16.xpose.msra.mxu0 %v450
        %454 = vmatprep.subr.bf16.mxu0 0
        %455 = vmatpush1.bf16.xpose.msra.mxu0 0
        %456 = vmatprep.subr.bf16.mxu0 0
        %457 = vmatpush1.bf16.xpose.msra.mxu0 0
        %458 = vmatprep.subr.bf16.mxu0 0
        %459 = vmatpush1.bf16.xpose.msra.mxu0 0
        %460 = vmatprep.subr.bf16.mxu0 0
        %461 = vmatpush1.bf16.xpose.msra.mxu0 0
        %462 = vmatprep.subr.bf16.mxu0 0
        %463 = vmatpush1.bf16.xpose.msra.mxu0 0
        %464 = vmatprep.subr.bf16.mxu0 0
        %465 = vmatpush1.bf16.xpose.msra.mxu0 0
        %466 = vmatprep.subr.bf16.mxu0 0
        %467 = vmatpush1.bf16.xpose.msra.mxu0 0
        %468 = vmatprep.subr.bf16.mxu0 0
        %469 = vmatpush1.bf16.xpose.msra.mxu0 0
        %470 = vmatprep.subr.bf16.mxu0 0
        %471 = vmatpush1.bf16.xpose.msra.mxu0 0
        %472 = vmatprep.subr.bf16.mxu0 0
        %473 = vmatpush1.bf16.xpose.msra.mxu0 0
        %474 = vmatprep.subr.bf16.mxu0 0
        %475 = vmatpush1.bf16.xpose.msra.mxu0 0
        %476 = vmatprep.subr.bf16.mxu0 0
        %477 = vmatpush1.bf16.xpose.msra.mxu0 0
        %478 = vmatprep.subr.bf16.mxu0 0
        %479 = vmatpush1.bf16.xpose.msra.mxu0 0
        %480 = vmatprep.subr.bf16.mxu0 0
        %481 = vmatpush1.bf16.xpose.msra.mxu0 0
        %482 = vmatprep.subr.bf16.mxu0 0
        %483 = vmatpush1.bf16.xpose.msra.mxu0 0
        %484 = vmatprep.mubr.bf16.mxu0 0
        %485 = vmatmul.mubr.bf16.gmra.mrb[0].mxu0 %v447
        %v486 = vpop.f32.mrb[0].mxu0
        %v487 = vadd.f32 0.0, %v486
        %v488 = vpop.f32.mrb[0].mxu0
        %v489 = vpop.f32.mrb[0].mxu0
        %v490 = vpop.f32.mrb[0].mxu0
        %491 = vdwg.mxu0
        %492 = vrot.lane.b32.xlu0 %v346, 96
        %v493 = vpop.permute.xlu0 %492
        %v495 = vsel %vm349, %v346, 0
        %v498 = vsel %vm349, %v493, 0
        %500 = vmatprep.subr.bf16.mxu0 0
        %501 = vmatpush1.bf16.xpose.msra.mxu0 %v498
        %502 = vmatprep.subr.bf16.mxu0 0
        %503 = vmatpush1.bf16.xpose.msra.mxu0 0
        %504 = vmatprep.subr.bf16.mxu0 0
        %505 = vmatpush1.bf16.xpose.msra.mxu0 0
        %506 = vmatprep.subr.bf16.mxu0 0
        %507 = vmatpush1.bf16.xpose.msra.mxu0 0
        %508 = vmatprep.subr.bf16.mxu0 0
        %509 = vmatpush1.bf16.xpose.msra.mxu0 0
        %510 = vmatprep.subr.bf16.mxu0 0
        %511 = vmatpush1.bf16.xpose.msra.mxu0 0
        %512 = vmatprep.subr.bf16.mxu0 0
        %513 = vmatpush1.bf16.xpose.msra.mxu0 0
        %514 = vmatprep.subr.bf16.mxu0 0
        %515 = vmatpush1.bf16.xpose.msra.mxu0 0
        %516 = vmatprep.subr.bf16.mxu0 0
        %517 = vmatpush1.bf16.xpose.msra.mxu0 0
        %518 = vmatprep.subr.bf16.mxu0 0
        %519 = vmatpush1.bf16.xpose.msra.mxu0 0
        %520 = vmatprep.subr.bf16.mxu0 0
        %521 = vmatpush1.bf16.xpose.msra.mxu0 0
        %522 = vmatprep.subr.bf16.mxu0 0
        %523 = vmatpush1.bf16.xpose.msra.mxu0 0
        %524 = vmatprep.subr.bf16.mxu0 0
        %525 = vmatpush1.bf16.xpose.msra.mxu0 0
        %526 = vmatprep.subr.bf16.mxu0 0
        %527 = vmatpush1.bf16.xpose.msra.mxu0 0
        %528 = vmatprep.subr.bf16.mxu0 0
        %529 = vmatpush1.bf16.xpose.msra.mxu0 0
        %530 = vmatprep.subr.bf16.mxu0 0
        %531 = vmatpush1.bf16.xpose.msra.mxu0 0
        %532 = vmatprep.mubr.bf16.mxu0 0
        %533 = vmatmul.mubr.bf16.gmra.mrb[0].mxu0 %v495
        %v534 = vpop.f32.mrb[0].mxu0
        %v535 = vadd.f32 0.0, %v534
        %v536 = vpop.f32.mrb[0].mxu0
        %v537 = vpop.f32.mrb[0].mxu0
        %v538 = vpop.f32.mrb[0].mxu0
        %539 = vdwg.mxu0
        %v540 = vsel %vm349, %v391, -inf
        %541 = vmax.xlane.f32.xlu0 %v540
        %v542 = vpop.xlane.xlu0 %541
        %v543 = vsel %vm349, %v439, -inf
        %544 = vmax.xlane.f32.xlu0 %v543
        %v545 = vpop.xlane.xlu0 %544
        %v546 = vsel %vm349, %v487, -inf
        %547 = vmax.xlane.f32.xlu0 %v546
        %v548 = vpop.xlane.xlu0 %547
        %v549 = vsel %vm349, %v535, -inf
        %550 = vmax.xlane.f32.xlu0 %v549
        %v551 = vpop.xlane.xlu0 %550
        %v552 = vsub.f32 %v391, %v542
        %v553 = vsub.f32 %v439, %v545
        %v554 = vsub.f32 %v487, %v548
        %v555 = vsub.f32 %v535, %v551
        %v556 = vmul.f32 %v552, 1.442695
        %v557 = vpow.pop %v556
        %v558 = vmul.f32 %v553, 1.442695
        %v559 = vpow.pop %v558
        %v560 = vmul.f32 %v554, 1.442695
        %v561 = vpow.pop %v560
        %v562 = vmul.f32 %v555, 1.442695
        %v563 = vpow.pop %v562
        %v564 = vsel %vm349, %v557, 0.0
        %565 = vadd.xlane.f32.xlu0 %v564
        %v566 = vpop.xlane.xlu0 %565
        %v567 = vsel %vm349, %v559, 0.0
        %568 = vadd.xlane.f32.xlu0 %v567
        %v569 = vpop.xlane.xlu0 %568
        %v570 = vsel %vm349, %v561, 0.0
        %571 = vadd.xlane.f32.xlu0 %v570
        %v572 = vpop.xlane.xlu0 %571
        %v573 = vsel %vm349, %v563, 0.0
        %574 = vadd.xlane.f32.xlu0 %v573
        %v575 = vpop.xlane.xlu0 %574
        %v576 = vrcp.pop %v566
        %v577 = vrcp.pop %v569
        %v578 = vrcp.pop %v572
        %v579 = vrcp.pop %v575
        %v580 = vmul.f32 %v557, %v576
        %v581 = vmul.f32 %v559, %v577
        %v582 = vmul.f32 %v561, %v578
        %v583 = vmul.f32 %v563, %v579
        %v584 = vpack.c.bf16 %v580, %v580
        %v585 = vpack.c.bf16 %v581, %v581
        %v586 = vpack.c.bf16 %v582, %v582
        %v587 = vpack.c.bf16 %v583, %v583
        %588 = vrot.lane.b32.xlu0 %v339, 64
        %v589 = vpop.permute.xlu0 %588
        %v591 = vsel %vm349, %v584, 0
        %vm593 = vcmask 1043456
        %v595 = vsel %vm593, %v589, 0
        %597 = vmatprep.subr.bf16.mxu0 0
        %598 = vmatpush1.bf16.msra.mxu0 %v595
        %599 = vmatprep.subr.bf16.mxu0 0
        %600 = vmatpush1.bf16.msra.mxu0 0
        %601 = vmatprep.subr.bf16.mxu0 0
        %602 = vmatpush1.bf16.msra.mxu0 0
        %603 = vmatprep.subr.bf16.mxu0 0
        %604 = vmatpush1.bf16.msra.mxu0 0
        %605 = vmatprep.subr.bf16.mxu0 0
        %606 = vmatpush1.bf16.msra.mxu0 0
        %607 = vmatprep.subr.bf16.mxu0 0
        %608 = vmatpush1.bf16.msra.mxu0 0
        %609 = vmatprep.subr.bf16.mxu0 0
        %610 = vmatpush1.bf16.msra.mxu0 0
        %611 = vmatprep.subr.bf16.mxu0 0
        %612 = vmatpush1.bf16.msra.mxu0 0
        %613 = vmatprep.subr.bf16.mxu0 0
        %614 = vmatpush1.bf16.msra.mxu0 0
        %615 = vmatprep.subr.bf16.mxu0 0
        %616 = vmatpush1.bf16.msra.mxu0 0
        %617 = vmatprep.subr.bf16.mxu0 0
        %618 = vmatpush1.bf16.msra.mxu0 0
        %619 = vmatprep.subr.bf16.mxu0 0
        %620 = vmatpush1.bf16.msra.mxu0 0
        %621 = vmatprep.subr.bf16.mxu0 0
        %622 = vmatpush1.bf16.msra.mxu0 0
        %623 = vmatprep.subr.bf16.mxu0 0
        %624 = vmatpush1.bf16.msra.mxu0 0
        %625 = vmatprep.subr.bf16.mxu0 0
        %626 = vmatpush1.bf16.msra.mxu0 0
        %627 = vmatprep.subr.bf16.mxu0 0
        %628 = vmatpush1.bf16.msra.mxu0 0
        %629 = vmatprep.mubr.bf16.mxu0 0
        %630 = vmatmul.mubr.bf16.gmra.mrb[0].mxu0 %v591
        %v631 = vpop.f32.mrb[0].mxu0
        %v632 = vadd.f32 0.0, %v631
        %v633 = vpop.f32.mrb[0].mxu0
        %v634 = vpop.f32.mrb[0].mxu0
        %v635 = vpop.f32.mrb[0].mxu0
        %636 = vdwg.mxu0
        %637 = vrot.lane.b32.xlu0 %v342, 64
        %v638 = vpop.permute.xlu0 %637
        %v640 = vsel %vm349, %v585, 0
        %v643 = vsel %vm593, %v638, 0
        %645 = vmatprep.subr.bf16.mxu0 0
        %646 = vmatpush1.bf16.msra.mxu0 %v643
        %647 = vmatprep.subr.bf16.mxu0 0
        %648 = vmatpush1.bf16.msra.mxu0 0
        %649 = vmatprep.subr.bf16.mxu0 0
        %650 = vmatpush1.bf16.msra.mxu0 0
        %651 = vmatprep.subr.bf16.mxu0 0
        %652 = vmatpush1.bf16.msra.mxu0 0
        %653 = vmatprep.subr.bf16.mxu0 0
        %654 = vmatpush1.bf16.msra.mxu0 0
        %655 = vmatprep.subr.bf16.mxu0 0
        %656 = vmatpush1.bf16.msra.mxu0 0
        %657 = vmatprep.subr.bf16.mxu0 0
        %658 = vmatpush1.bf16.msra.mxu0 0
        %659 = vmatprep.subr.bf16.mxu0 0
        %660 = vmatpush1.bf16.msra.mxu0 0
        %661 = vmatprep.subr.bf16.mxu0 0
        %662 = vmatpush1.bf16.msra.mxu0 0
        %663 = vmatprep.subr.bf16.mxu0 0
        %664 = vmatpush1.bf16.msra.mxu0 0
        %665 = vmatprep.subr.bf16.mxu0 0
        %666 = vmatpush1.bf16.msra.mxu0 0
        %667 = vmatprep.subr.bf16.mxu0 0
        %668 = vmatpush1.bf16.msra.mxu0 0
        %669 = vmatprep.subr.bf16.mxu0 0
        %670 = vmatpush1.bf16.msra.mxu0 0
        %671 = vmatprep.subr.bf16.mxu0 0
        %672 = vmatpush1.bf16.msra.mxu0 0
        %673 = vmatprep.subr.bf16.mxu0 0
        %674 = vmatpush1.bf16.msra.mxu0 0
        %675 = vmatprep.subr.bf16.mxu0 0
        %676 = vmatpush1.bf16.msra.mxu0 0
        %677 = vmatprep.mubr.bf16.mxu0 0
        %678 = vmatmul.mubr.bf16.gmra.mrb[0].mxu0 %v640
        %v679 = vpop.f32.mrb[0].mxu0
        %v680 = vadd.f32 0.0, %v679
        %v681 = vpop.f32.mrb[0].mxu0
        %v682 = vpop.f32.mrb[0].mxu0
        %v683 = vpop.f32.mrb[0].mxu0
        %684 = vdwg.mxu0
        %685 = vrot.lane.b32.xlu0 %v344, 64
        %v686 = vpop.permute.xlu0 %685
        %v688 = vsel %vm349, %v586, 0
        %v691 = vsel %vm593, %v686, 0
        %693 = vmatprep.subr.bf16.mxu0 0
        %694 = vmatpush1.bf16.msra.mxu0 %v691
        %695 = vmatprep.subr.bf16.mxu0 0
        %696 = vmatpush1.bf16.msra.mxu0 0
        %697 = vmatprep.subr.bf16.mxu0 0
        %698 = vmatpush1.bf16.msra.mxu0 0
        %699 = vmatprep.subr.bf16.mxu0 0
        %700 = vmatpush1.bf16.msra.mxu0 0
        %701 = vmatprep.subr.bf16.mxu0 0
        %702 = vmatpush1.bf16.msra.mxu0 0
        %703 = vmatprep.subr.bf16.mxu0 0
        %704 = vmatpush1.bf16.msra.mxu0 0
        %705 = vmatprep.subr.bf16.mxu0 0
        %706 = vmatpush1.bf16.msra.mxu0 0
        %707 = vmatprep.subr.bf16.mxu0 0
        %708 = vmatpush1.bf16.msra.mxu0 0
        %709 = vmatprep.subr.bf16.mxu0 0
        %710 = vmatpush1.bf16.msra.mxu0 0
        %711 = vmatprep.subr.bf16.mxu0 0
        %712 = vmatpush1.bf16.msra.mxu0 0
        %713 = vmatprep.subr.bf16.mxu0 0
        %714 = vmatpush1.bf16.msra.mxu0 0
        %715 = vmatprep.subr.bf16.mxu0 0
        %716 = vmatpush1.bf16.msra.mxu0 0
        %717 = vmatprep.subr.bf16.mxu0 0
        %718 = vmatpush1.bf16.msra.mxu0 0
        %719 = vmatprep.subr.bf16.mxu0 0
        %720 = vmatpush1.bf16.msra.mxu0 0
        %721 = vmatprep.subr.bf16.mxu0 0
        %722 = vmatpush1.bf16.msra.mxu0 0
        %723 = vmatprep.subr.bf16.mxu0 0
        %724 = vmatpush1.bf16.msra.mxu0 0
        %725 = vmatprep.mubr.bf16.mxu0 0
        %726 = vmatmul.mubr.bf16.gmra.mrb[0].mxu0 %v688
        %v727 = vpop.f32.mrb[0].mxu0
        %v728 = vadd.f32 0.0, %v727
        %v729 = vpop.f32.mrb[0].mxu0
        %v730 = vpop.f32.mrb[0].mxu0
        %v731 = vpop.f32.mrb[0].mxu0
        %732 = vdwg.mxu0
        %733 = vrot.lane.b32.xlu0 %v346, 64
        %v734 = vpop.permute.xlu0 %733
        %v736 = vsel %vm349, %v587, 0
        %v739 = vsel %vm593, %v734, 0
        %741 = vmatprep.subr.bf16.mxu0 0
        %742 = vmatpush1.bf16.msra.mxu0 %v739
        %743 = vmatprep.subr.bf16.mxu0 0
        %744 = vmatpush1.bf16.msra.mxu0 0
        %745 = vmatprep.subr.bf16.mxu0 0
        %746 = vmatpush1.bf16.msra.mxu0 0
        %747 = vmatprep.subr.bf16.mxu0 0
        %748 = vmatpush1.bf16.msra.mxu0 0
        %749 = vmatprep.subr.bf16.mxu0 0
        %750 = vmatpush1.bf16.msra.mxu0 0
        %751 = vmatprep.subr.bf16.mxu0 0
        %752 = vmatpush1.bf16.msra.mxu0 0
        %753 = vmatprep.subr.bf16.mxu0 0
        %754 = vmatpush1.bf16.msra.mxu0 0
        %755 = vmatprep.subr.bf16.mxu0 0
        %756 = vmatpush1.bf16.msra.mxu0 0
        %757 = vmatprep.subr.bf16.mxu0 0
        %758 = vmatpush1.bf16.msra.mxu0 0
        %759 = vmatprep.subr.bf16.mxu0 0
        %760 = vmatpush1.bf16.msra.mxu0 0
        %761 = vmatprep.subr.bf16.mxu0 0
        %762 = vmatpush1.bf16.msra.mxu0 0
        %763 = vmatprep.subr.bf16.mxu0 0
        %764 = vmatpush1.bf16.msra.mxu0 0
        %765 = vmatprep.subr.bf16.mxu0 0
        %766 = vmatpush1.bf16.msra.mxu0 0
        %767 = vmatprep.subr.bf16.mxu0 0
        %768 = vmatpush1.bf16.msra.mxu0 0
        %769 = vmatprep.subr.bf16.mxu0 0
        %770 = vmatpush1.bf16.msra.mxu0 0
        %771 = vmatprep.subr.bf16.mxu0 0
        %772 = vmatpush1.bf16.msra.mxu0 0
        %773 = vmatprep.mubr.bf16.mxu0 0
        %774 = vmatmul.mubr.bf16.gmra.mrb[0].mxu0 %v736
        %v775 = vpop.f32.mrb[0].mxu0
        %v776 = vadd.f32 0.0, %v775
        %v777 = vpop.f32.mrb[0].mxu0
        %v778 = vpop.f32.mrb[0].mxu0
        %v779 = vpop.f32.mrb[0].mxu0
        %780 = vdwg.mxu0
        %v781 = vpack.c.bf16 %v632, %v632
        %vm782 = vcmask 60416
        %783 = vst.msk [vmem:[#allocation2] sm:$0xf] %vm782, %v781
        %v784 = vpack.c.bf16 %v680, %v680
        %v786 = vunpack.c.l.b16 %v784
        %v787 = vpack.c.b16 %v786, %v786
        %788 = vrot.lane.b32.xlu0 %v787, 8
        %v789 = vpop.permute.xlu0 %788
        %vm791 = vcmask 126016
        %792 = vst.msk [vmem:[#allocation2] sm:$0xf] %vm791, %v789
        %v793 = vpack.c.bf16 %v728, %v728
        %v795 = vunpack.c.l.b16 %v793
        %v796 = vpack.c.b16 %v795, %v795
        %797 = vrot.lane.b32.xlu0 %v796, 16
        %v798 = vpop.permute.xlu0 %797
        %vm800 = vcmask 191616
        %801 = vst.msk [vmem:[#allocation2] sm:$0xf] %vm800, %v798
        %v802 = vpack.c.bf16 %v776, %v776
        %v804 = vunpack.c.l.b16 %v802
        %v805 = vpack.c.b16 %v804, %v804
        %806 = vrot.lane.b32.xlu0 %v805, 24
        %v807 = vpop.permute.xlu0 %806
        %vm809 = vcmask 257216
        %810 = vst.msk [vmem:[#allocation2] sm:$0xf] %vm809, %v807
        %v811 = vld [vmem:[#allocation2] sm:$0xf]
        %v812 = vld [vmem:[#allocation8] sm:$0xf]
        %v813 = vld [vmem:[#allocation8 + $0x4] sm:$0xf]
        %v814 = vld [vmem:[#allocation8 + $0x8] sm:$0xf]
        %v815 = vld [vmem:[#allocation8 + $0xc] sm:$0xf]
        %v816 = vld [vmem:[%s4] sm:$0x1]
        %v818 = vlaneseq
        %v819 = vshrl.u32 %v818, 7
        %v820 = vsub.s32 0, %v819
        %v821 = vrot.slane %v816, %v820
        %v827 = vunpack.c.l.b16 %v812
        %v828 = vunpack.c.l.b16 %v813
        %v829 = vunpack.c.l.b16 %v814
        %v830 = vunpack.c.l.b16 %v815
        %v831 = vpack.c.b16 %v828, %v827
        %v832 = vpack.c.b16 %v830, %v829
        %v836 = vsel %vm295, %v811, 0
        %838 = vmatprep.subr.bf16.mxu0 0
        %839 = vmatpush1.bf16.msra.mxu0 %v831
        %840 = vmatprep.subr.bf16.mxu0 0
        %841 = vmatpush1.bf16.msra.mxu0 %v832
        %842 = vmatprep.subr.bf16.mxu0 0
        %843 = vmatpush1.bf16.msra.mxu0 0
        %844 = vmatprep.subr.bf16.mxu0 0
        %845 = vmatpush1.bf16.msra.mxu0 0
        %846 = vmatprep.subr.bf16.mxu0 0
        %847 = vmatpush1.bf16.msra.mxu0 0
        %848 = vmatprep.subr.bf16.mxu0 0
        %849 = vmatpush1.bf16.msra.mxu0 0
        %850 = vmatprep.subr.bf16.mxu0 0
        %851 = vmatpush1.bf16.msra.mxu0 0
        %852 = vmatprep.subr.bf16.mxu0 0
        %853 = vmatpush1.bf16.msra.mxu0 0
        %854 = vmatprep.subr.bf16.mxu0 0
        %855 = vmatpush1.bf16.msra.mxu0 0
        %856 = vmatprep.subr.bf16.mxu0 0
        %857 = vmatpush1.bf16.msra.mxu0 0
        %858 = vmatprep.subr.bf16.mxu0 0
        %859 = vmatpush1.bf16.msra.mxu0 0
        %860 = vmatprep.subr.bf16.mxu0 0
        %861 = vmatpush1.bf16.msra.mxu0 0
        %862 = vmatprep.subr.bf16.mxu0 0
        %863 = vmatpush1.bf16.msra.mxu0 0
        %864 = vmatprep.subr.bf16.mxu0 0
        %865 = vmatpush1.bf16.msra.mxu0 0
        %866 = vmatprep.subr.bf16.mxu0 0
        %867 = vmatpush1.bf16.msra.mxu0 0
        %868 = vmatprep.subr.bf16.mxu0 0
        %869 = vmatpush1.bf16.msra.mxu0 0
        %870 = vmatprep.mubr.bf16.mxu0 0
        %871 = vmatmul.mubr.bf16.gmra.mrb[0].mxu0 %v836
        %v872 = vpop.f32.mrb[0].mxu0
        %v873 = vadd.f32 %v821, %v872
        %v874 = vpop.f32.mrb[0].mxu0
        %v875 = vpop.f32.mrb[0].mxu0
        %v876 = vpop.f32.mrb[0].mxu0
        %877 = vdwg.mxu0
        %878 = vst.msk [vmem:[%s268] sm:$0xff] %vm295, %v873
        %s879 = sand.u32 %s141, 1
        %s880 = scalar_lea.sflag [#allocation5], %s879
        %s881 = sand.u32 %s141, 1
        %s882 = smul.addr %s881, 8
        %s883 = scalar_lea.vmem [#allocation9], %s882
        // Predicated region
        $region53: #{tpu_custom_call.1} parent=39 // pred_check
          %p884 = pneg %p151
        $region54: #{tpu_custom_call.1} parent=39 // pred_check_branch
          %886 = sbr.rel (%p884) target = $region56
        $region55: #{tpu_custom_call.1} parent=39 // pred_region
          %s888 = ssub.s32 128, 128
          %889 = vsyncadd %s880, %s888
          %s890 = smul.addr %s23, 128
          %s891 = scalar_lea.hbm %s5, %s890
          %s893 = sshll.u32 %s883, 4
          %s894 = int_to_ptr.vmem [resolvable:$true] %s893
          %896 = dma.vmem_to_hbm [thread:$0]  %s894, 128, %s891, %s880
        $region56: #{tpu_custom_call.1} parent=39 // pred_fallthru
          _
      $region40: #{tpu_custom_call.1} parent=5 // pred_fallthru
        _
      %p897 = scmp.le.s32.totalorder 2, %s18
      // Predicated region
      $region57: #{tpu_custom_call.1} parent=5 // pred_check
        %p898 = pneg %p897
      $region58: #{tpu_custom_call.1} parent=5 // pred_check_branch
        %900 = sbr.rel (%p898) target = $region60
      $region59: #{tpu_custom_call.1} parent=5 // pred_region
        %s901 = ssub.s32 %s18, 2
        // Predicated region
        $region61: #{tpu_custom_call.1} parent=59 // pred_check
          %p902 = pneg %p157
        $region62: #{tpu_custom_call.1} parent=59 // pred_check_branch
          %904 = sbr.rel (%p902) target = $region64
        $region63: #{tpu_custom_call.1} parent=59 // pred_region
          %s905 = sand.u32 %s142, 1
          %s906 = scalar_lea.sflag [#allocation5], %s905
          %s907 = sand.u32 %s142, 1
          %s908 = smul.addr %s907, 8
          %s909 = scalar_lea.vmem [#allocation9], %s908
          %910 = dma.done %s906, 128
        $region64: #{tpu_custom_call.1} parent=59 // pred_fallthru
          _
      $region60: #{tpu_custom_call.1} parent=5 // pred_fallthru
        _
    $region6: #{tpu_custom_call.1} parent=1 // loop_footer
      %s22 = sadd.s32 1, %s18
    $region7: #{tpu_custom_call.1} parent=1 // loop_footer_branch
      %17 = sbr.rel target = $region3
    $region8: #{tpu_custom_call.1} parent=1 // loop_exit
      _
    %911 = vsyncpa [#allocation4], 1
    %s912 = scalar_lea.sflag [#allocation4], 1
    %913 = vsyncpa %s912, 1
    %914 = vsyncpa [#allocation7], 1
    %915 = vsyncpa [#allocation5], 1
    %s916 = scalar_lea.sflag [#allocation5], 1
    %917 = vsyncpa %s916, 1

</llo_original>
